<compile_context>
chip_gen: v6e
topology: v6e:2x2x1
jax: 0.10.0
libtpu: 0.0.40
codegen_flags: <defaults>
</compile_context>

<pallas_src>
import functools

import jax
import jax.numpy as jnp
from jax import lax
from jax.experimental import pallas as pl
from jax.experimental.pallas import tpu as pltpu


# ----------------------------------------------------------------------------
# Kernel.  Grid = (batch, n_stripes).  Per grid step:
#   xf_ref : (1, C, HW)  full flattened input (resident across the stripe axis)
#   xs_ref : (1, C, T)   this stripe's columns of x
#   w_ref  : (C, C)      convB 1x1 weight (OI)
#   p_ref  : (2,)        [gamma, beta] in SMEM
#   o_ref  : (1, C, T)   this stripe's columns of the output
#   bf_ref : (C, HW)     scratch: convB(x) (reused as B, C and D), MXU dtype
#   att_ref: (C, C)      scratch: channel-attention softmax matrix A
# ----------------------------------------------------------------------------
def danet_kernel(xf_ref, xs_ref, w_ref, p_ref, o_ref, bf_ref, att_ref):
    j = pl.program_id(1)
    gamma = p_ref[0]
    beta = p_ref[1]

    # ---- once per batch element: 1x1 conv + channel-attention matrix -------
    @pl.when(j == 0)
    def _():
        x = xf_ref[0].astype(jnp.float32)                 # (C, HW)
        w_b = w_ref[...].astype(jnp.float32)              # (C, C)
        # convB(x): shared by B, C and D in the torch module.
        bf = jnp.dot(w_b, x, preferred_element_type=jnp.float32)
        bf_ref[...] = bf.astype(bf_ref.dtype)
        # Channel attention A = softmax(x @ x^T, dim=-1) — contraction over the
        # spatial axis of both operands, no transpose emitted.
        att = lax.dot_general(x, x, (((1,), (1,)), ((), ())),
                              preferred_element_type=jnp.float32)   # (C, C)
        att = att - jnp.max(att, axis=-1, keepdims=True)
        ea = jnp.exp(att)
        att_ref[...] = ea / jnp.sum(ea, axis=-1, keepdims=True)     # exact divide

    # ---- one row-stripe of S -> one column-stripe of the output ------------
    x_s = xs_ref[0].astype(jnp.float32)                   # (C, T) stripe of x
    w_b = w_ref[...].astype(jnp.float32)
    bf_all = bf_ref[...]                                  # (C, HW) MXU dtype

    # convB on this stripe only (tiny C-deep matmul; avoids any dynamic lane
    # slicing of the bf scratch).
    bf_blk = jnp.dot(w_b, x_s,
                     preferred_element_type=jnp.float32).astype(bf_ref.dtype)

    # S rows for this stripe: s[i, k] = sum_c Bf[c, stripe_i] * Bf[c, k]
    # (contract the channel axis of both operands — no transpose).
    s = lax.dot_general(bf_blk, bf_all, (((0,), (0,)), ((), ())),
                        preferred_element_type=jnp.float32)         # (T, HW)
    s = s - jnp.max(s, axis=-1, keepdims=True)
    p = jnp.exp(s)
    p = p / jnp.sum(p, axis=-1, keepdims=True)                      # exact softmax

    # E columns for this stripe: pos[c, i] = sum_k Bf[c, k] * S[i, k]
    # (contract the spatial/HW axis of both operands — S is never transposed).
    pos = lax.dot_general(bf_all, p.astype(bf_ref.dtype),
                          (((1,), (1,)), ((), ())),
                          preferred_element_type=jnp.float32)       # (C, T)

    # Channel attention for this stripe: chan[i, e] = sum_j A[j, i] * x[j, e]
    chan = lax.dot_general(att_ref[...], x_s, (((0,), (0,)), ((), ())),
                           preferred_element_type=jnp.float32)      # (C, T)

    # out = (gamma*E + x) + (beta*X + x)
    out = gamma * pos + beta * chan + 2.0 * x_s
    o_ref[...] = out[None].astype(o_ref.dtype)


def _default_row_tile(hw: int, budget_bytes: int = 16 << 20) -> int:
    """Rows of S per stripe; live state ≈ 6*T*HW bytes (f32 logits + bf16 probs)."""
    if hw % 128 != 0:
        return hw                                        # tiny/odd inputs: one stripe
    t = (budget_bytes // (6 * hw)) // 128 * 128
    t = int(max(128, min(t, hw)))
    while hw % t:                                        # keep HW divisible
        t -= 128
    return t


@functools.partial(jax.jit, static_argnames=("row_tile", "mxu_dtype"))
def danet_forward(x, convB_w, gamma, beta, *, row_tile=None,
                  mxu_dtype=jnp.bfloat16):
    bs, c, h, w = x.shape
    hw = h * w
    if row_tile is None:
        row_tile = _default_row_tile(hw)
    assert hw % row_tile == 0, (hw, row_tile)
    n_tiles = hw // row_tile

    xf = x.reshape(bs, c, hw)                            # lane-dense flatten (free)
    w_b = convB_w.reshape(c, c)                          # (O, I, 1, 1) -> (O, I)
    params = jnp.stack(
        [gamma.reshape(()), beta.reshape(())]).astype(jnp.float32)  # (2,) -> SMEM

    out = pl.pallas_call(
        danet_kernel,
        out_shape=jax.ShapeDtypeStruct((bs, c, hw), x.dtype),
        grid=(bs, n_tiles),
        in_specs=[
            # full x, resident across the stripe axis (same block index for all j)
            pl.BlockSpec((1, c, hw), lambda b, j: (b, 0, 0)),
            # this stripe's columns of x
            pl.BlockSpec((1, c, row_tile), lambda b, j: (b, 0, j)),
            pl.BlockSpec((c, c), lambda b, j: (0, 0)),
            # gamma/beta scalars live in SMEM
            pl.BlockSpec(memory_space=pltpu.MemorySpace.SMEM),
        ],
        out_specs=pl.BlockSpec((1, c, row_tile), lambda b, j: (b, 0, j)),
        scratch_shapes=[
            pltpu.VMEM((c, hw), mxu_dtype),              # convB(x) = B = C = D
            pltpu.VMEM((c, c), jnp.float32),             # channel-attention matrix A
        ],
        compiler_params=pltpu.CompilerParams(
            dimension_semantics=("parallel", "arbitrary"),
            vmem_limit_bytes=32 << 20,                   # explicit, safe on v5e/v6e/v7x
        ),
        cost_estimate=pl.CostEstimate(
            flops=bs * (4 * c * hw * hw + 6 * c * c * hw),
            transcendentals=bs * (hw * hw + c * c),
            bytes_accessed=bs * (2 * c * hw + c * c) * 4,
        ),
    )(xf, xf, w_b, params)
    return out.reshape(bs, c, h, w)


# ----------------------------------------------------------------------------
# Pure-JAX reference (f32, highest matmul precision, matches torch semantics,
# including the reuse of convB for B, C and D).
# ----------------------------------------------------------------------------
def reference(x, convB_w, gamma, beta):
    bs, c, h, w = x.shape
    hw = h * w
    xf = x.reshape(bs, c, hw)
    w_b = convB_w.reshape(c, c)
    g = gamma.reshape(())
    b = beta.reshape(())
    prec = jax.lax.Precision.HIGHEST

    # PositionAttention
    bf = jnp.einsum("oi,bie->boe", w_b, xf, precision=prec)           # (b, C, HW)
    s = jax.nn.softmax(jnp.einsum("bci,bcj->bij", bf, bf, precision=prec), axis=-1)
    e = jnp.einsum("bcj,bij->bci", bf, s, precision=prec)             # D @ S^T
    pa = g * e + xf

    # ChannelAttention
    att = jax.nn.softmax(jnp.einsum("bie,bje->bij", xf, xf, precision=prec), axis=-1)
    x2 = jnp.einsum("bji,bje->bie", att, xf, precision=prec)          # A^T @ x
    ca = b * x2 + xf

    return (pa + ca).reshape(bs, c, h, w)


if __name__ == "__main__":
    bs, c, H, W = 2, 4, 16, 16
    key = jax.random.PRNGKey(0)
    k0, k1 = jax.random.split(key, 2)

    x = 0.5 * jax.random.normal(k0, (bs, c, H, W), jnp.float32)
    convB_w = 0.5 * jax.random.normal(k1, (c, c, 1, 1), jnp.float32)   # OIHW 1x1, no bias
    # torch inits gamma/beta to 0.0; nonzero values exercise both attention paths.
    gamma = jnp.array([0.6], jnp.float32)
    beta = jnp.array([-0.4], jnp.float32)

    ref = reference(x, convB_w, gamma, beta)

    # f32-MXU path: parity check (row_tile=128 exercises the multi-stripe path).
    out_f32 = jax.block_until_ready(
        danet_forward(x, convB_w, gamma, beta, row_tile=128, mxu_dtype=jnp.float32))
    assert out_f32.shape == (bs, c, H, W), out_f32.shape
    err_f32 = float(jnp.max(jnp.abs(out_f32 - ref)))
    assert jnp.allclose(out_f32, ref, atol=5e-3, rtol=5e-3), err_f32

    # Default perf path: bf16 MXU operands with f32 accumulation (per review;
    # tolerance loosened accordingly — softmax-scale values, C=4 contraction).
    out = jax.block_until_ready(danet_forward(x, convB_w, gamma, beta, row_tile=128))
    assert out.shape == (bs, c, H, W), out.shape
    err_bf16 = float(jnp.max(jnp.abs(out - ref)))
    assert jnp.allclose(out, ref, atol=2e-2, rtol=2e-2), (err_f32, err_bf16)

    print("KERNEL_OK")
</pallas_src>

<mosaic_0001>
module attributes {stable_mosaic.version = 11 : i64} {
  func.func @danet_kernel(%arg0: i32, %arg1: i32, %arg2: memref<1x4x256xf32, #tpu.memory_space<vmem>>, %arg3: memref<1x4x128xf32, #tpu.memory_space<vmem>>, %arg4: memref<4x4xf32, #tpu.memory_space<vmem>>, %arg5: memref<2xf32, #tpu.memory_space<smem>>, %arg6: memref<1x4x128xf32, #tpu.memory_space<vmem>>, %arg7: memref<4x256xf32, #tpu.memory_space<vmem>>, %arg8: memref<4x4xf32, #tpu.memory_space<vmem>>) attributes {dimension_semantics = [#tpu.dimension_semantics<parallel>, #tpu.dimension_semantics<arbitrary>], iteration_bounds = array<i64: 2, 2>, scalar_prefetch = 0 : i64, scratch_operands = 2 : i64, tpu.core_type = #tpu.core_type<tc>, window_params = [{transform_indices = @transform_0, window_bounds = array<i64: 1, 4, 256>}, {transform_indices = @transform_1, window_bounds = array<i64: 1, 4, 128>}, {pipeline_mode = #tpu.pipeline_mode<synchronous>, transform_indices = @transform_2, window_bounds = array<i64: 4, 4>}, {transform_indices = @transform_3, window_bounds = array<i64: 2>}, {transform_indices = @transform_4, window_bounds = array<i64: 1, 4, 128>}]} {
    %c0 = arith.constant 0 : index
    %0 = memref.load %arg5[%c0] : memref<2xf32, #tpu.memory_space<smem>>
    %c1 = arith.constant 1 : index
    %1 = memref.load %arg5[%c1] : memref<2xf32, #tpu.memory_space<smem>>
    %c0_i32 = arith.constant 0 : i32
    %2 = arith.cmpi eq, %arg1, %c0_i32 : i32
    %3 = arith.extui %2 : i1 to i32
    %c0_i32_0 = arith.constant 0 : i32
    %4 = arith.cmpi ne, %3, %c0_i32_0 : i32
    scf.if %4 {
      %c0_19 = arith.constant 0 : index
      %c0_20 = arith.constant 0 : index
      %c0_21 = arith.constant 0 : index
      %33 = vector.load %arg2[%c0_19, %c0_20, %c0_21] : memref<1x4x256xf32, #tpu.memory_space<vmem>>, vector<1x4x256xf32>
      %34 = vector.shape_cast %33 : vector<1x4x256xf32> to vector<4x256xf32>
      %c0_22 = arith.constant 0 : index
      %c0_23 = arith.constant 0 : index
      %35 = vector.load %arg4[%c0_22, %c0_23] : memref<4x4xf32, #tpu.memory_space<vmem>>, vector<4x4xf32>
      %cst_24 = arith.constant dense<0.000000e+00> : vector<4x256xf32>
      %36 = tpu.matmul %35, %34, %cst_24 {dimension_numbers = #tpu.dot_dimension_numbers<[1], [0], [0], [1], [0, 0, 1, 1], [], []>} : vector<4x4xf32>, vector<4x256xf32>, vector<4x256xf32> -> vector<4x256xf32>
      %c0_25 = arith.constant 0 : index
      %c0_26 = arith.constant 0 : index
      %37 = vector.load %arg7[%c0_25, %c0_26] : memref<4x256xf32, #tpu.memory_space<vmem>>, vector<4x256xf32>
      tpu.vector_store %arg7[%c0_25, %c0_26], %36 {strides = array<i32>} : memref<4x256xf32, #tpu.memory_space<vmem>>, vector<4x256xf32>,
      %cst_27 = arith.constant dense<0.000000e+00> : vector<4x4xf32>
      %38 = tpu.matmul %34, %34, %cst_27 {dimension_numbers = #tpu.dot_dimension_numbers<[1], [1], [0], [0], [0, 0, 1, 0], [], []>} : vector<4x256xf32>, vector<4x256xf32>, vector<4x4xf32> -> vector<4x4xf32>
      %cst_28 = arith.constant dense<0xFF800000> : vector<4xf32>
      %39 = vector.multi_reduction <maximumf>, %38, %cst_28 [1] : vector<4x4xf32> to vector<4xf32>
      %40 = vector.shape_cast %39 : vector<4xf32> to vector<4x1xf32>
      %41 = vector.broadcast %40 : vector<4x1xf32> to vector<4x4xf32>
      %42 = arith.subf %38, %41 : vector<4x4xf32>
      %43 = math.exp %42 : vector<4x4xf32>
      %cst_29 = arith.constant dense<0.000000e+00> : vector<4xf32>
      %44 = vector.multi_reduction <add>, %43, %cst_29 [1] : vector<4x4xf32> to vector<4xf32>
      %45 = vector.shape_cast %44 : vector<4xf32> to vector<4x1xf32>
      %46 = vector.broadcast %45 : vector<4x1xf32> to vector<4x4xf32>
      %47 = arith.divf %43, %46 : vector<4x4xf32>
      %c0_30 = arith.constant 0 : index
      %c0_31 = arith.constant 0 : index
      %48 = vector.load %arg8[%c0_30, %c0_31] : memref<4x4xf32, #tpu.memory_space<vmem>>, vector<4x4xf32>
      tpu.vector_store %arg8[%c0_30, %c0_31], %47 {strides = array<i32>} : memref<4x4xf32, #tpu.memory_space<vmem>>, vector<4x4xf32>,
    } else {
    }
    %c0_1 = arith.constant 0 : index
    %c0_2 = arith.constant 0 : index
    %c0_3 = arith.constant 0 : index
    %5 = vector.load %arg3[%c0_1, %c0_2, %c0_3] : memref<1x4x128xf32, #tpu.memory_space<vmem>>, vector<1x4x128xf32>
    %6 = vector.shape_cast %5 : vector<1x4x128xf32> to vector<4x128xf32>
    %c0_4 = arith.constant 0 : index
    %c0_5 = arith.constant 0 : index
    %7 = vector.load %arg4[%c0_4, %c0_5] : memref<4x4xf32, #tpu.memory_space<vmem>>, vector<4x4xf32>
    %c0_6 = arith.constant 0 : index
    %c0_7 = arith.constant 0 : index
    %8 = vector.load %arg7[%c0_6, %c0_7] : memref<4x256xf32, #tpu.memory_space<vmem>>, vector<4x256xf32>
    %cst = arith.constant dense<0.000000e+00> : vector<4x128xf32>
    %9 = tpu.matmul %7, %6, %cst {dimension_numbers = #tpu.dot_dimension_numbers<[1], [0], [0], [1], [0, 0, 1, 1], [], []>} : vector<4x4xf32>, vector<4x128xf32>, vector<4x128xf32> -> vector<4x128xf32>
    %cst_8 = arith.constant dense<0.000000e+00> : vector<128x256xf32>
    %10 = tpu.matmul %9, %8, %cst_8 {dimension_numbers = #tpu.dot_dimension_numbers<[0], [0], [1], [1], [0, 1, 1, 1], [], []>} : vector<4x128xf32>, vector<4x256xf32>, vector<128x256xf32> -> vector<128x256xf32>
    %cst_9 = arith.constant dense<0xFF800000> : vector<128xf32>
    %11 = vector.multi_reduction <maximumf>, %10, %cst_9 [1] : vector<128x256xf32> to vector<128xf32>
    %12 = vector.shape_cast %11 : vector<128xf32> to vector<128x1xf32>
    %13 = vector.broadcast %12 : vector<128x1xf32> to vector<128x256xf32>
    %14 = arith.subf %10, %13 : vector<128x256xf32>
    %15 = math.exp %14 : vector<128x256xf32>
    %cst_10 = arith.constant dense<0.000000e+00> : vector<128xf32>
    %16 = vector.multi_reduction <add>, %15, %cst_10 [1] : vector<128x256xf32> to vector<128xf32>
    %17 = vector.shape_cast %16 : vector<128xf32> to vector<128x1xf32>
    %18 = vector.broadcast %17 : vector<128x1xf32> to vector<128x256xf32>
    %19 = arith.divf %15, %18 : vector<128x256xf32>
    %cst_11 = arith.constant dense<0.000000e+00> : vector<4x128xf32>
    %20 = tpu.matmul %8, %19, %cst_11 {dimension_numbers = #tpu.dot_dimension_numbers<[1], [1], [0], [0], [0, 0, 1, 0], [], []>} : vector<4x256xf32>, vector<128x256xf32>, vector<4x128xf32> -> vector<4x128xf32>
    %c0_12 = arith.constant 0 : index
    %c0_13 = arith.constant 0 : index
    %21 = vector.load %arg8[%c0_12, %c0_13] : memref<4x4xf32, #tpu.memory_space<vmem>>, vector<4x4xf32>
    %cst_14 = arith.constant dense<0.000000e+00> : vector<4x128xf32>
    %22 = tpu.matmul %21, %6, %cst_14 {dimension_numbers = #tpu.dot_dimension_numbers<[0], [0], [1], [1], [0, 1, 1, 1], [], []>} : vector<4x4xf32>, vector<4x128xf32>, vector<4x128xf32> -> vector<4x128xf32>
    %23 = vector.broadcast %0 : f32 to vector<4x128xf32>
    %24 = arith.mulf %23, %20 : vector<4x128xf32>
    %25 = vector.broadcast %1 : f32 to vector<4x128xf32>
    %26 = arith.mulf %25, %22 : vector<4x128xf32>
    %27 = arith.addf %24, %26 : vector<4x128xf32>
    %cst_15 = arith.constant 2.000000e+00 : f32
    %28 = vector.broadcast %cst_15 : f32 to vector<4x128xf32>
    %29 = arith.mulf %28, %6 : vector<4x128xf32>
    %30 = arith.addf %27, %29 : vector<4x128xf32>
    %31 = vector.shape_cast %30 : vector<4x128xf32> to vector<1x4x128xf32>
    %c0_16 = arith.constant 0 : index
    %c0_17 = arith.constant 0 : index
    %c0_18 = arith.constant 0 : index
    %32 = vector.load %arg6[%c0_16, %c0_17, %c0_18] : memref<1x4x128xf32, #tpu.memory_space<vmem>>, vector<1x4x128xf32>
    tpu.vector_store %arg6[%c0_16, %c0_17, %c0_18], %31 {strides = array<i32>} : memref<1x4x128xf32, #tpu.memory_space<vmem>>, vector<1x4x128xf32>,
    return
  }
  func.func @transform_0(%arg0: i32, %arg1: i32) -> (i32, i32, i32) {
    %c0_i32 = arith.constant 0 : i32
    %c0_i32_0 = arith.constant 0 : i32
    %c0_i32_1 = arith.constant 0 : i32
    return %arg0, %c0_i32, %c0_i32_0 : i32, i32, i32
  }
  func.func @transform_1(%arg0: i32, %arg1: i32) -> (i32, i32, i32) {
    %c0_i32 = arith.constant 0 : i32
    %c0_i32_0 = arith.constant 0 : i32
    return %arg0, %c0_i32, %arg1 : i32, i32, i32
  }
  func.func @transform_2(%arg0: i32, %arg1: i32) -> (i32, i32) {
    %c0_i32 = arith.constant 0 : i32
    %c0_i32_0 = arith.constant 0 : i32
    %c0_i32_1 = arith.constant 0 : i32
    return %c0_i32, %c0_i32_0 : i32, i32
  }
  func.func @transform_3(%arg0: i32, %arg1: i32) -> i32 {
    %c0_i32 = arith.constant 0 : i32
    %c0_i32_0 = arith.constant 0 : i32
    return %c0_i32 : i32
  }
  func.func @transform_4(%arg0: i32, %arg1: i32) -> (i32, i32, i32) {
    %c0_i32 = arith.constant 0 : i32
    %c0_i32_0 = arith.constant 0 : i32
    return %arg0, %c0_i32, %arg1 : i32, i32, i32
  }
}

</mosaic_0001>

<llo_original>
// kernel: danet_forward.1
$region0: #{danet_forward.1}
  #allocation0 [shape = 'u32[]', space=smem, size = 0x4, offset = 0x4, fixed_abs, tag = 'smem constant byte address 0x4 - core index']
  #allocation1 [shape = 'u32[144,128]{1,0:T(1,128)}', space=vmem, size = 0x12000, scoped, tag = 'internal scratch']
  #allocation2 [shape = 'f32[4,256]{1,0:T(4,128)}', space=vmem, size = 0x1000, scoped, tag = 'scratch operand']
  #allocation3 [shape = 'f32[4,4]{1,0:T(4,128)}', space=vmem, size = 0x800, scoped, tag = 'scratch operand']
  %s0 = inlined_call_operand.vmem [shape: f32[2,4,256], index: 0, kind: input, shape index: {}, may-alias: {0,1}]
  %s1 = inlined_call_operand.vmem [shape: f32[2,4,256], index: 1, kind: input, shape index: {}, may-alias: {0,1}]
  %s2 = inlined_call_operand.vmem [shape: f32[4,4], index: 2, kind: input, shape index: {}]
  %s3 = inlined_call_operand.vmem [shape: f32[2], index: 3, kind: input, shape index: {}]
  %s4 = inlined_call_operand.vmem [shape: f32[2,4,256], index: 4, kind: output, shape index: {}]
  %s5 = sld [smem:[#allocation0]]
  $region57: #{danet_forward.1} parent=0
    _
  %s7 = ssub.s32 1, %s5
  %s8 = scalar_select 0, %s7, %s5
  $region1: #{danet_forward.1} parent=0
    #allocation4 [shape = 'u8[512]{0}', space=smem, size = 0x200, scoped, tag = 'input window, operand 3, single buffered']
    #allocation5 [shape = 's32[2]{0}', space=sflag, size = 0x8, scoped, tag = 'scoped memory for danet_forward.1']
    %9 = vsyncpa [#allocation5], 0
    loop: start=0, step=1, limit=6
    $region2: #{danet_forward.1} parent=1 // loop_pre_header
      _
    $region3: #{danet_forward.1} parent=1 // loop_header
      %s11 = sphi 0, %s15
      %p12 = scmp.ge.s32.totalorder %s11, 6
      %s18 = sphi 0, %s30
      %s19 = sphi 0, %s26
      %s20 = sphi 0, %s18
      %s21 = sphi 0, %s19
      %s22 = sphi 0, %s20
      %s23 = sphi 0, %s21
      %s33 = sphi 0, %s35
      %s36 = sphi 0, %s33
      %s37 = sphi 0, %s36
      %s53 = sphi 0, %s37
      %s61 = sphi 0, %s63
      %s64 = sphi 0, %s61
      %s65 = sphi 0, %s64
      %s81 = sphi 0, %s65
      %s85 = sphi 0, %s85
      %s87 = sphi 0, %s85
      %s88 = sphi 0, %s87
      %s102 = sphi 0, %s88
      %s106 = sphi 0, %s106
      %s108 = sphi 0, %s106
      %s109 = sphi 0, %s108
      %s123 = sphi 0, %s109
      %s131 = sphi 0, %s133
      %s134 = sphi 0, %s131
      %s135 = sphi 0, %s134
      %s151 = sphi 0, %s135
    $region4: #{danet_forward.1} parent=1 // loop_header_branch
      %14 = sbr.rel (%p12) target = $region8
    $region5: #{danet_forward.1} parent=1 // loop_body
      %s16 = ssub.s32 %s11, 1
      %s17 = ssub.s32 %s11, 2
      %s24 = sadd.s32 1, %s19
      %p25 = scmp.ge.s32.totalorder %s24, 2
      %s26 = scalar_select %p25, 0, %s24
      %s27 = sadd.s32 1, %s18
      %s28 = scalar_select %p25, %s27, %s18
      %p29 = scmp.ge.s32.totalorder %s28, 2
      %s30 = scalar_select %p29, 0, %s28
      %s31 = ssub.s32 %s18, %s30
      %p32 = scmp.eq.s32.totalorder %s31, 0
      %s34 = sadd.s32 %s33, 1
      %s35 = scalar_select %p32, %s33, %s34
      %p38 = pneg %p32
      %p39 = scmp.eq.s32.totalorder %s11, 3
      %p40 = por %p38, %p39
      %p41 = scmp.ne.s32.totalorder %s33, %s36
      %p42 = scmp.eq.s32.totalorder %s11, 0
      %p43 = por %p41, %p42
      %p44 = scmp.ne.s32.totalorder %s33, %s36
      %p45 = scmp.eq.s32.totalorder %s16, 3
      %p46 = por %p44, %p45
      %p47 = scmp.ne.s32.totalorder %s36, %s37
      %p48 = scmp.eq.s32.totalorder %s16, 0
      %p49 = por %p47, %p48
      %p50 = scmp.ne.s32.totalorder %s36, %s37
      %p51 = scmp.eq.s32.totalorder %s17, 3
      %p52 = por %p50, %p51
      %p54 = scmp.ne.s32.totalorder %s37, %s53
      %p55 = scmp.eq.s32.totalorder %s17, 0
      %p56 = por %p54, %p55
      %s57 = ssub.s32 %s18, %s30
      %s58 = ssub.s32 %s19, %s26
      %s59 = sor.u32 %s57, %s58
      %p60 = scmp.eq.s32.totalorder %s59, 0
      %s62 = sadd.s32 %s61, 1
      %s63 = scalar_select %p60, %s61, %s62
      %p66 = pneg %p60
      %p67 = scmp.eq.s32.totalorder %s11, 3
      %p68 = por %p66, %p67
      %p69 = scmp.ne.s32.totalorder %s61, %s64
      %p70 = scmp.eq.s32.totalorder %s11, 0
      %p71 = por %p69, %p70
      %p72 = scmp.ne.s32.totalorder %s61, %s64
      %p73 = scmp.eq.s32.totalorder %s16, 3
      %p74 = por %p72, %p73
      %p75 = scmp.ne.s32.totalorder %s64, %s65
      %p76 = scmp.eq.s32.totalorder %s16, 0
      %p77 = por %p75, %p76
      %p78 = scmp.ne.s32.totalorder %s64, %s65
      %p79 = scmp.eq.s32.totalorder %s17, 3
      %p80 = por %p78, %p79
      %p82 = scmp.ne.s32.totalorder %s65, %s81
      %p83 = scmp.eq.s32.totalorder %s17, 0
      %p84 = por %p82, %p83
      %s86 = sadd.s32 %s85, 1
      %p89 = scmp.eq.s32.totalorder %s11, 3
      %p90 = scmp.ne.s32.totalorder %s85, %s87
      %p91 = scmp.eq.s32.totalorder %s11, 0
      %p92 = por %p90, %p91
      %p93 = scmp.ne.s32.totalorder %s85, %s87
      %p94 = scmp.eq.s32.totalorder %s16, 3
      %p95 = por %p93, %p94
      %p96 = scmp.ne.s32.totalorder %s87, %s88
      %p97 = scmp.eq.s32.totalorder %s16, 0
      %p98 = por %p96, %p97
      %p99 = scmp.ne.s32.totalorder %s87, %s88
      %p100 = scmp.eq.s32.totalorder %s17, 3
      %p101 = por %p99, %p100
      %p103 = scmp.ne.s32.totalorder %s88, %s102
      %p104 = scmp.eq.s32.totalorder %s17, 0
      %p105 = por %p103, %p104
      %s107 = sadd.s32 %s106, 1
      %p110 = scmp.eq.s32.totalorder %s11, 3
      %p111 = scmp.ne.s32.totalorder %s106, %s108
      %p112 = scmp.eq.s32.totalorder %s11, 0
      %p113 = por %p111, %p112
      %p114 = scmp.ne.s32.totalorder %s106, %s108
      %p115 = scmp.eq.s32.totalorder %s16, 3
      %p116 = por %p114, %p115
      %p117 = scmp.ne.s32.totalorder %s108, %s109
      %p118 = scmp.eq.s32.totalorder %s16, 0
      %p119 = por %p117, %p118
      %p120 = scmp.ne.s32.totalorder %s108, %s109
      %p121 = scmp.eq.s32.totalorder %s17, 3
      %p122 = por %p120, %p121
      %p124 = scmp.ne.s32.totalorder %s109, %s123
      %p125 = scmp.eq.s32.totalorder %s17, 0
      %p126 = por %p124, %p125
      %s127 = ssub.s32 %s18, %s30
      %s128 = ssub.s32 %s19, %s26
      %s129 = sor.u32 %s127, %s128
      %p130 = scmp.eq.s32.totalorder %s129, 0
      %s132 = sadd.s32 %s131, 1
      %s133 = scalar_select %p130, %s131, %s132
      %p136 = pneg %p130
      %p137 = scmp.eq.s32.totalorder %s11, 3
      %p138 = por %p136, %p137
      %p139 = scmp.ne.s32.totalorder %s131, %s134
      %p140 = scmp.eq.s32.totalorder %s11, 0
      %p141 = por %p139, %p140
      %p142 = scmp.ne.s32.totalorder %s131, %s134
      %p143 = scmp.eq.s32.totalorder %s16, 3
      %p144 = por %p142, %p143
      %p145 = scmp.ne.s32.totalorder %s134, %s135
      %p146 = scmp.eq.s32.totalorder %s16, 0
      %p147 = por %p145, %p146
      %p148 = scmp.ne.s32.totalorder %s134, %s135
      %p149 = scmp.eq.s32.totalorder %s17, 3
      %p150 = por %p148, %p149
      %p152 = scmp.ne.s32.totalorder %s135, %s151
      %p153 = scmp.eq.s32.totalorder %s17, 0
      %p154 = por %p152, %p153
      %p155 = scmp.le.s32.totalorder 1, %s11
      %p156 = scmp.lt.s32.totalorder %s11, 5
      %p157 = pnand %p155, %p156
      %p158 = pneg %p157
      // Predicated region
      $region9: #{danet_forward.1} parent=5 // pred_check
        _
      $region10: #{danet_forward.1} parent=5 // pred_check_branch
        %160 = sbr.rel (%p157) target = $region12
      $region11: #{danet_forward.1} parent=5 // pred_region
        %s161 = ssub.s32 %s11, 1
        // Predicated region
        $region13: #{danet_forward.1} parent=11 // pred_check
          %p162 = pneg %p98
        $region14: #{danet_forward.1} parent=11 // pred_check_branch
          %164 = sbr.rel (%p162) target = $region16
        $region15: #{danet_forward.1} parent=11 // pred_region
          _
        $region16: #{danet_forward.1} parent=11 // pred_fallthru
          _
        // Predicated region
        $region17: #{danet_forward.1} parent=11 // pred_check
          %p165 = pneg %p119
        $region18: #{danet_forward.1} parent=11 // pred_check_branch
          %167 = sbr.rel (%p165) target = $region20
        $region19: #{danet_forward.1} parent=11 // pred_region
          %s169 = ssub.s32 16, 16
          %170 = vsyncadd [#allocation5], %s169
          %s172 = sshll.u32 %s3, 4
          %s173 = int_to_ptr.vmem [resolvable:$true] %s172
          %175 = dma.vmem_to_smem %s173, 16, [#allocation4], [#allocation5]
        $region20: #{danet_forward.1} parent=11 // pred_fallthru
          _
      $region12: #{danet_forward.1} parent=5 // pred_fallthru
        _
      %p176 = scmp.lt.s32.totalorder %s11, 4
      // Predicated region
      $region21: #{danet_forward.1} parent=5 // pred_check
        %p177 = pneg %p176
      $region22: #{danet_forward.1} parent=5 // pred_check_branch
        %179 = sbr.rel (%p177) target = $region24
      $region23: #{danet_forward.1} parent=5 // pred_region
        // Predicated region
        $region25: #{danet_forward.1} parent=23 // pred_check
          %p180 = pneg %p43
        $region26: #{danet_forward.1} parent=23 // pred_check_branch
          %182 = sbr.rel (%p180) target = $region28
        $region27: #{danet_forward.1} parent=23 // pred_region
          %p183 = scmp.lt.s32.totalorder %s18, 1
          %s184 = scalar_select %p183, %s18, 1
          %s185 = smul.addr %s184, 2
          %s186 = smul.addr %s185, 4
          %s187 = scalar_lea.vmem %s0, %s186
        $region28: #{danet_forward.1} parent=23 // pred_fallthru
          _
        // Predicated region
        $region29: #{danet_forward.1} parent=23 // pred_check
          %p188 = pneg %p71
        $region30: #{danet_forward.1} parent=23 // pred_check_branch
          %190 = sbr.rel (%p188) target = $region32
        $region31: #{danet_forward.1} parent=23 // pred_region
          %p191 = scmp.lt.s32.totalorder %s18, 1
          %s192 = scalar_select %p191, %s18, 1
          %p193 = scmp.lt.s32.totalorder %s19, 1
          %s194 = scalar_select %p193, %s19, 1
          %s195 = smul.addr %s192, 2
          %s196 = sadd.s32 %s194, %s195
          %s197 = smul.addr %s196, 4
          %s198 = scalar_lea.vmem %s1, %s197
        $region32: #{danet_forward.1} parent=23 // pred_fallthru
          _
      $region24: #{danet_forward.1} parent=5 // pred_fallthru
        _
      %p199 = scmp.le.s32.totalorder 1, %s11
      %p200 = scmp.lt.s32.totalorder %s11, 5
      %p201 = pnand %p199, %p200
      %p202 = pneg %p201
      // Predicated region
      $region33: #{danet_forward.1} parent=5 // pred_check
        _
      $region34: #{danet_forward.1} parent=5 // pred_check_branch
        %204 = sbr.rel (%p201) target = $region36
      $region35: #{danet_forward.1} parent=5 // pred_region
        %s205 = ssub.s32 %s11, 1
        // Predicated region
        $region37: #{danet_forward.1} parent=35 // pred_check
          %p206 = pneg %p119
        $region38: #{danet_forward.1} parent=35 // pred_check_branch
          %208 = sbr.rel (%p206) target = $region40
        $region39: #{danet_forward.1} parent=35 // pred_region
          %209 = dma.done [#allocation5], 16
        $region40: #{danet_forward.1} parent=35 // pred_fallthru
          _
        %210 = sfence
        %p211 = scmp.lt.s32.totalorder %s20, 1
        %s212 = scalar_select %p211, %s20, 1
        %s213 = smul.addr %s212, 2
        %s214 = smul.addr %s213, 4
        %s215 = scalar_lea.vmem %s0, %s214
        %p216 = pneg %p49
        %p217 = pneg %p46
        %p218 = scmp.lt.s32.totalorder %s20, 1
        %s219 = scalar_select %p218, %s20, 1
        %p220 = scmp.lt.s32.totalorder %s21, 1
        %s221 = scalar_select %p220, %s21, 1
        %s222 = smul.addr %s219, 2
        %s223 = sadd.s32 %s221, %s222
        %s224 = smul.addr %s223, 4
        %s225 = scalar_lea.vmem %s1, %s224
        %p226 = pneg %p77
        %p227 = pneg %p74
        %p228 = pneg %p98
        %p229 = pneg %p95
        %p230 = pneg %p119
        %p231 = pneg %p116
        %p232 = pneg %p147
        %p233 = pneg %p144
        %p234 = scmp.lt.s32.totalorder %s20, 1
        %s235 = scalar_select %p234, %s20, 1
        %p236 = scmp.lt.s32.totalorder %s21, 1
        %s237 = scalar_select %p236, %s21, 1
        %s238 = smul.addr %s235, 2
        %s239 = sadd.s32 %s237, %s238
        %s240 = smul.addr %s239, 4
        %s241 = scalar_lea.vmem %s4, %s240
        %p242 = scmp.lt.s32.totalorder %s20, 1
        %s243 = scalar_select %p242, %s20, 1
        %s244 = smul.addr %s243, 2
        %s245 = smul.addr %s244, 4
        %s246 = scalar_lea.vmem %s0, %s245
        %p247 = scmp.lt.s32.totalorder %s20, 1
        %s248 = scalar_select %p247, %s20, 1
        %p249 = scmp.lt.s32.totalorder %s21, 1
        %s250 = scalar_select %p249, %s21, 1
        %s251 = smul.addr %s248, 2
        %s252 = sadd.s32 %s250, %s251
        %s253 = smul.addr %s252, 4
        %s254 = scalar_lea.vmem %s1, %s253
        %p255 = scmp.lt.s32.totalorder %s20, 1
        %s256 = scalar_select %p255, %s20, 1
        %p257 = scmp.lt.s32.totalorder %s21, 1
        %s258 = scalar_select %p257, %s21, 1
        %s259 = smul.addr %s256, 2
        %s260 = sadd.s32 %s258, %s259
        %s261 = smul.addr %s260, 4
        %s262 = scalar_lea.vmem %s4, %s261
        %s263 = sld [smem:[#allocation4]]
        %s264 = sld [smem:[#allocation4 + $0x1]]
        %p265 = scmp.eq.s32.totalorder %s21, 0
        // Predicated region
        $region41: #{danet_forward.1} parent=35 // pred_check
          %p266 = pneg %p265
        $region42: #{danet_forward.1} parent=35 // pred_check_branch
          %268 = sbr.rel (%p266) target = $region44
        $region43: #{danet_forward.1} parent=35 // pred_region
          %v269 = vld [vmem:[%s246] sm:$0xff]
          %v270 = vld [vmem:[%s2] sm:$0xf]
          %v272 = vcombine.high %v269, %v269
          %vm273 = vcmask 31744
          %v275 = vsel %vm273, %v270, 0
          %vm277 = vcmask 1043456
          %v278 = vsel %vm277, %v269, 0
          %v280 = vsel %vm277, %v272, 0
          %282 = vmatprep.subr.mxu0 0.0
          %283 = vmatpush1.msra.mxu0 0.0
          %284 = vmatprep.subr.mxu0 0.0
          %285 = vmatpush1.msra.mxu0 0.0
          %286 = vmatprep.subr.mxu0 0.0
          %287 = vmatpush1.msra.mxu0 0.0
          %288 = vmatprep.subr.mxu0 0.0
          %289 = vmatpush1.msra.mxu0 0.0
          %290 = vmatprep.subr.mxu0 0.0
          %291 = vmatpush1.msra.mxu0 0.0
          %292 = vmatprep.subr.mxu0 0.0
          %293 = vmatpush1.msra.mxu0 0.0
          %294 = vmatprep.subr.mxu0 0.0
          %295 = vmatpush1.msra.mxu0 0.0
          %296 = vmatprep.subr.mxu0 0.0
          %297 = vmatpush1.msra.mxu0 0.0
          %298 = vmatprep.subr.mxu0 0.0
          %299 = vmatpush1.msra.mxu0 0.0
          %300 = vmatprep.subr.mxu0 0.0
          %301 = vmatpush1.msra.mxu0 0.0
          %302 = vmatprep.subr.mxu0 0.0
          %303 = vmatpush1.msra.mxu0 0.0
          %304 = vmatprep.subr.mxu0 0.0
          %305 = vmatpush1.msra.mxu0 0.0
          %306 = vmatprep.subr.mxu0 0.0
          %307 = vmatpush1.msra.mxu0 0.0
          %308 = vmatprep.subr.mxu0 0.0
          %309 = vmatpush1.msra.mxu0 0.0
          %310 = vmatprep.subr.mxu0 0.0
          %311 = vmatpush1.msra.mxu0 0.0
          %312 = vmatprep.subr.mxu0 %v280
          %313 = vmatpush1.msra.mxu0 %v278
          %314 = vmatprep.subr.mxu0 0.0
          %315 = vmatpush2.msra.mxu0 0.0
          %316 = vmatprep.subr.mxu0 0.0
          %317 = vmatpush2.msra.mxu0 0.0
          %318 = vmatprep.subr.mxu0 0.0
          %319 = vmatpush2.msra.mxu0 0.0
          %320 = vmatprep.subr.mxu0 0.0
          %321 = vmatpush2.msra.mxu0 0.0
          %322 = vmatprep.subr.mxu0 0.0
          %323 = vmatpush2.msra.mxu0 0.0
          %324 = vmatprep.subr.mxu0 0.0
          %325 = vmatpush2.msra.mxu0 0.0
          %326 = vmatprep.subr.mxu0 0.0
          %327 = vmatpush2.msra.mxu0 0.0
          %328 = vmatprep.subr.mxu0 0.0
          %329 = vmatpush2.msra.mxu0 0.0
          %330 = vmatprep.subr.mxu0 0.0
          %331 = vmatpush2.msra.mxu0 0.0
          %332 = vmatprep.subr.mxu0 0.0
          %333 = vmatpush2.msra.mxu0 0.0
          %334 = vmatprep.subr.mxu0 0.0
          %335 = vmatpush2.msra.mxu0 0.0
          %336 = vmatprep.subr.mxu0 0.0
          %337 = vmatpush2.msra.mxu0 0.0
          %338 = vmatprep.subr.mxu0 0.0
          %339 = vmatpush2.msra.mxu0 0.0
          %340 = vmatprep.subr.mxu0 0.0
          %341 = vmatpush2.msra.mxu0 0.0
          %342 = vmatprep.subr.mxu0 0.0
          %343 = vmatpush2.msra.mxu0 0.0
          %344 = vmatprep.subr.mxu0 0.0
          %345 = vmatpush2.msra.mxu0 0.0
          %346 = vmatprep.mubr.f32.mxu0 0.0
          %347 = vmatmul.mubr.f32.gmra.mxu0 %v275
          %v348 = vpop.f32.mrf.mxu0
          %v349 = vadd.f32 0.0, %v348
          %v350 = vpop.f32.mrf.mxu0
          %v351 = vadd.f32 0.0, %v350
          %352 = vdwg.mxu0
          %v355 = vcombine.low %v349, %v351
          %357 = vst [vmem:[#allocation2] sm:$0xff] %v355
          %359 = vmatprep.subr.mxu0 0.0
          %360 = vmatpush1.xpose.msra.mxu0 0.0
          %361 = vmatprep.subr.mxu0 0.0
          %362 = vmatpush1.xpose.msra.mxu0 0.0
          %363 = vmatprep.subr.mxu0 0.0
          %364 = vmatpush1.xpose.msra.mxu0 0.0
          %365 = vmatprep.subr.mxu0 0.0
          %366 = vmatpush1.xpose.msra.mxu0 0.0
          %367 = vmatprep.subr.mxu0 0.0
          %368 = vmatpush1.xpose.msra.mxu0 0.0
          %369 = vmatprep.subr.mxu0 0.0
          %370 = vmatpush1.xpose.msra.mxu0 0.0
          %371 = vmatprep.subr.mxu0 0.0
          %372 = vmatpush1.xpose.msra.mxu0 0.0
          %373 = vmatprep.subr.mxu0 0.0
          %374 = vmatpush1.xpose.msra.mxu0 0.0
          %375 = vmatprep.subr.mxu0 0.0
          %376 = vmatpush1.xpose.msra.mxu0 0.0
          %377 = vmatprep.subr.mxu0 0.0
          %378 = vmatpush1.xpose.msra.mxu0 0.0
          %379 = vmatprep.subr.mxu0 0.0
          %380 = vmatpush1.xpose.msra.mxu0 0.0
          %381 = vmatprep.subr.mxu0 0.0
          %382 = vmatpush1.xpose.msra.mxu0 0.0
          %383 = vmatprep.subr.mxu0 0.0
          %384 = vmatpush1.xpose.msra.mxu0 0.0
          %385 = vmatprep.subr.mxu0 0.0
          %386 = vmatpush1.xpose.msra.mxu0 0.0
          %387 = vmatprep.subr.mxu0 0.0
          %388 = vmatpush1.xpose.msra.mxu0 0.0
          %389 = vmatprep.subr.mxu0 %v272
          %390 = vmatpush1.xpose.msra.mxu0 %v269
          %391 = vmatprep.subr.mxu0 0.0
          %392 = vmatpush2.xpose.msra.mxu0 0.0
          %393 = vmatprep.subr.mxu0 0.0
          %394 = vmatpush2.xpose.msra.mxu0 0.0
          %395 = vmatprep.subr.mxu0 0.0
          %396 = vmatpush2.xpose.msra.mxu0 0.0
          %397 = vmatprep.subr.mxu0 0.0
          %398 = vmatpush2.xpose.msra.mxu0 0.0
          %399 = vmatprep.subr.mxu0 0.0
          %400 = vmatpush2.xpose.msra.mxu0 0.0
          %401 = vmatprep.subr.mxu0 0.0
          %402 = vmatpush2.xpose.msra.mxu0 0.0
          %403 = vmatprep.subr.mxu0 0.0
          %404 = vmatpush2.xpose.msra.mxu0 0.0
          %405 = vmatprep.subr.mxu0 0.0
          %406 = vmatpush2.xpose.msra.mxu0 0.0
          %407 = vmatprep.subr.mxu0 0.0
          %408 = vmatpush2.xpose.msra.mxu0 0.0
          %409 = vmatprep.subr.mxu0 0.0
          %410 = vmatpush2.xpose.msra.mxu0 0.0
          %411 = vmatprep.subr.mxu0 0.0
          %412 = vmatpush2.xpose.msra.mxu0 0.0
          %413 = vmatprep.subr.mxu0 0.0
          %414 = vmatpush2.xpose.msra.mxu0 0.0
          %415 = vmatprep.subr.mxu0 0.0
          %416 = vmatpush2.xpose.msra.mxu0 0.0
          %417 = vmatprep.subr.mxu0 0.0
          %418 = vmatpush2.xpose.msra.mxu0 0.0
          %419 = vmatprep.subr.mxu0 0.0
          %420 = vmatpush2.xpose.msra.mxu0 0.0
          %421 = vmatprep.subr.mxu0 0.0
          %422 = vmatpush2.xpose.msra.mxu0 0.0
          %423 = vmatprep.mubr.f32.mxu0 %v272
          %424 = vmatmul.mubr.f32.gmra.mxu0 %v269
          %v425 = vpop.f32.mrf.mxu0
          %v426 = vadd.f32 0.0, %v425
          %v427 = vpop.f32.mrf.mxu0
          %428 = vdwg.mxu0
          %vm429 = vcmask 27648
          %v430 = vsel %vm429, %v426, -inf
          %431 = vmax.xlane.f32.xlu0 %v430
          %v432 = vpop.xlane.xlu0 %431
          %v433 = vsub.f32 %v426, %v432
          %v434 = vmul.f32 %v433, 1.442695
          %v435 = vpow.pop %v434
          %v436 = vsel %vm429, %v435, 0.0
          %437 = vadd.xlane.f32.xlu0 %v436
          %v438 = vpop.xlane.xlu0 %437
          %v439 = vrcp.pop %v438
          %v440 = vmul.f32 %v435, %v439
          %441 = vst.msk [vmem:[#allocation3] sm:$0xf] %vm429, %v440
        $region44: #{danet_forward.1} parent=35 // pred_fallthru
          _
        %v442 = vld [vmem:[%s254] sm:$0xf]
        %v443 = vld [vmem:[%s2] sm:$0xf]
        %v444 = vld [vmem:[#allocation2] sm:$0xff]
        %vm445 = vcmask 31744
        %v447 = vsel %vm445, %v443, 0
        %vm449 = vcmask 1043456
        %v451 = vsel %vm449, %v442, 0
        %453 = vmatprep.subr.mxu0 0.0
        %454 = vmatpush1.msra.mxu0 0.0
        %455 = vmatprep.subr.mxu0 0.0
        %456 = vmatpush1.msra.mxu0 0.0
        %457 = vmatprep.subr.mxu0 0.0
        %458 = vmatpush1.msra.mxu0 0.0
        %459 = vmatprep.subr.mxu0 0.0
        %460 = vmatpush1.msra.mxu0 0.0
        %461 = vmatprep.subr.mxu0 0.0
        %462 = vmatpush1.msra.mxu0 0.0
        %463 = vmatprep.subr.mxu0 0.0
        %464 = vmatpush1.msra.mxu0 0.0
        %465 = vmatprep.subr.mxu0 0.0
        %466 = vmatpush1.msra.mxu0 0.0
        %467 = vmatprep.subr.mxu0 0.0
        %468 = vmatpush1.msra.mxu0 0.0
        %469 = vmatprep.subr.mxu0 0.0
        %470 = vmatpush1.msra.mxu0 0.0
        %471 = vmatprep.subr.mxu0 0.0
        %472 = vmatpush1.msra.mxu0 0.0
        %473 = vmatprep.subr.mxu0 0.0
        %474 = vmatpush1.msra.mxu0 0.0
        %475 = vmatprep.subr.mxu0 0.0
        %476 = vmatpush1.msra.mxu0 0.0
        %477 = vmatprep.subr.mxu0 0.0
        %478 = vmatpush1.msra.mxu0 0.0
        %479 = vmatprep.subr.mxu0 0.0
        %480 = vmatpush1.msra.mxu0 0.0
        %481 = vmatprep.subr.mxu0 0.0
        %482 = vmatpush1.msra.mxu0 0.0
        %483 = vmatprep.subr.mxu0 0.0
        %484 = vmatpush1.msra.mxu0 %v451
        %485 = vmatprep.subr.mxu0 0.0
        %486 = vmatpush2.msra.mxu0 0.0
        %487 = vmatprep.subr.mxu0 0.0
        %488 = vmatpush2.msra.mxu0 0.0
        %489 = vmatprep.subr.mxu0 0.0
        %490 = vmatpush2.msra.mxu0 0.0
        %491 = vmatprep.subr.mxu0 0.0
        %492 = vmatpush2.msra.mxu0 0.0
        %493 = vmatprep.subr.mxu0 0.0
        %494 = vmatpush2.msra.mxu0 0.0
        %495 = vmatprep.subr.mxu0 0.0
        %496 = vmatpush2.msra.mxu0 0.0
        %497 = vmatprep.subr.mxu0 0.0
        %498 = vmatpush2.msra.mxu0 0.0
        %499 = vmatprep.subr.mxu0 0.0
        %500 = vmatpush2.msra.mxu0 0.0
        %501 = vmatprep.subr.mxu0 0.0
        %502 = vmatpush2.msra.mxu0 0.0
        %503 = vmatprep.subr.mxu0 0.0
        %504 = vmatpush2.msra.mxu0 0.0
        %505 = vmatprep.subr.mxu0 0.0
        %506 = vmatpush2.msra.mxu0 0.0
        %507 = vmatprep.subr.mxu0 0.0
        %508 = vmatpush2.msra.mxu0 0.0
        %509 = vmatprep.subr.mxu0 0.0
        %510 = vmatpush2.msra.mxu0 0.0
        %511 = vmatprep.subr.mxu0 0.0
        %512 = vmatpush2.msra.mxu0 0.0
        %513 = vmatprep.subr.mxu0 0.0
        %514 = vmatpush2.msra.mxu0 0.0
        %515 = vmatprep.subr.mxu0 0.0
        %516 = vmatpush2.msra.mxu0 0.0
        %517 = vmatprep.mubr.f32.mxu0 0.0
        %518 = vmatmul.mubr.f32.gmra.mxu0 %v447
        %v519 = vpop.f32.mrf.mxu0
        %v520 = vadd.f32 0.0, %v519
        %v521 = vpop.f32.mrf.mxu0
        %522 = vdwg.mxu0
        %523 = vxpose.xlu0.b32.start [1/16] %v520, 128
        %524 = vxpose.xlu0.b32.cont [2/16] 0.0, 128
        %525 = vxpose.xlu0.b32.cont [3/16] 0.0, 128
        %526 = vxpose.xlu0.b32.cont [4/16] 0.0, 128
        %527 = vxpose.xlu0.b32.cont [5/16] 0.0, 128
        %528 = vxpose.xlu0.b32.cont [6/16] 0.0, 128
        %529 = vxpose.xlu0.b32.cont [7/16] 0.0, 128
        %530 = vxpose.xlu0.b32.cont [8/16] 0.0, 128
        %531 = vxpose.xlu0.b32.cont [9/16] 0.0, 128
        %532 = vxpose.xlu0.b32.cont [10/16] 0.0, 128
        %533 = vxpose.xlu0.b32.cont [11/16] 0.0, 128
        %534 = vxpose.xlu0.b32.cont [12/16] 0.0, 128
        %535 = vxpose.xlu0.b32.cont [13/16] 0.0, 128
        %536 = vxpose.xlu0.b32.cont [14/16] 0.0, 128
        %537 = vxpose.xlu0.b32.cont [15/16] 0.0, 128
        %538 = vxpose.xlu0.b32.end [16/16] 0.0, 128
        %v539 = vpop.trf.xlu0
        %v540 = vpop.trf.xlu0
        %v541 = vpop.trf.xlu0
        %v542 = vpop.trf.xlu0
        %v543 = vpop.trf.xlu0
        %v544 = vpop.trf.xlu0
        %v545 = vpop.trf.xlu0
        %v546 = vpop.trf.xlu0
        %v547 = vpop.trf.xlu0
        %v548 = vpop.trf.xlu0
        %v549 = vpop.trf.xlu0
        %v550 = vpop.trf.xlu0
        %v551 = vpop.trf.xlu0
        %v552 = vpop.trf.xlu0
        %v553 = vpop.trf.xlu0
        %v554 = vpop.trf.xlu0
        %v556 = vcombine.high %v444, %v444
        %v558 = vsel %vm445, %v539, 0
        %v561 = vsel %vm445, %v540, 0
        %v564 = vsel %vm445, %v541, 0
        %v567 = vsel %vm445, %v542, 0
        %v570 = vsel %vm445, %v543, 0
        %v573 = vsel %vm445, %v544, 0
        %v576 = vsel %vm445, %v545, 0
        %v579 = vsel %vm445, %v546, 0
        %v582 = vsel %vm445, %v547, 0
        %v585 = vsel %vm445, %v548, 0
        %v588 = vsel %vm445, %v549, 0
        %v591 = vsel %vm445, %v550, 0
        %v594 = vsel %vm445, %v551, 0
        %v597 = vsel %vm445, %v552, 0
        %v600 = vsel %vm445, %v553, 0
        %v603 = vsel %vm445, %v554, 0
        %v605 = vsel %vm449, %v444, 0
        %v607 = vsel %vm449, %v556, 0
        %609 = vmatprep.subr.mxu0 0.0
        %610 = vmatpush1.msra.mxu0 0.0
        %611 = vmatprep.subr.mxu0 0.0
        %612 = vmatpush1.msra.mxu0 0.0
        %613 = vmatprep.subr.mxu0 0.0
        %614 = vmatpush1.msra.mxu0 0.0
        %615 = vmatprep.subr.mxu0 0.0
        %616 = vmatpush1.msra.mxu0 0.0
        %617 = vmatprep.subr.mxu0 0.0
        %618 = vmatpush1.msra.mxu0 0.0
        %619 = vmatprep.subr.mxu0 0.0
        %620 = vmatpush1.msra.mxu0 0.0
        %621 = vmatprep.subr.mxu0 0.0
        %622 = vmatpush1.msra.mxu0 0.0
        %623 = vmatprep.subr.mxu0 0.0
        %624 = vmatpush1.msra.mxu0 0.0
        %625 = vmatprep.subr.mxu0 0.0
        %626 = vmatpush1.msra.mxu0 0.0
        %627 = vmatprep.subr.mxu0 0.0
        %628 = vmatpush1.msra.mxu0 0.0
        %629 = vmatprep.subr.mxu0 0.0
        %630 = vmatpush1.msra.mxu0 0.0
        %631 = vmatprep.subr.mxu0 0.0
        %632 = vmatpush1.msra.mxu0 0.0
        %633 = vmatprep.subr.mxu0 0.0
        %634 = vmatpush1.msra.mxu0 0.0
        %635 = vmatprep.subr.mxu0 0.0
        %636 = vmatpush1.msra.mxu0 0.0
        %637 = vmatprep.subr.mxu0 0.0
        %638 = vmatpush1.msra.mxu0 0.0
        %639 = vmatprep.subr.mxu0 %v607
        %640 = vmatpush1.msra.mxu0 %v605
        %641 = vmatprep.subr.mxu0 0.0
        %642 = vmatpush2.msra.mxu0 0.0
        %643 = vmatprep.subr.mxu0 0.0
        %644 = vmatpush2.msra.mxu0 0.0
        %645 = vmatprep.subr.mxu0 0.0
        %646 = vmatpush2.msra.mxu0 0.0
        %647 = vmatprep.subr.mxu0 0.0
        %648 = vmatpush2.msra.mxu0 0.0
        %649 = vmatprep.subr.mxu0 0.0
        %650 = vmatpush2.msra.mxu0 0.0
        %651 = vmatprep.subr.mxu0 0.0
        %652 = vmatpush2.msra.mxu0 0.0
        %653 = vmatprep.subr.mxu0 0.0
        %654 = vmatpush2.msra.mxu0 0.0
        %655 = vmatprep.subr.mxu0 0.0
        %656 = vmatpush2.msra.mxu0 0.0
        %657 = vmatprep.subr.mxu0 0.0
        %658 = vmatpush2.msra.mxu0 0.0
        %659 = vmatprep.subr.mxu0 0.0
        %660 = vmatpush2.msra.mxu0 0.0
        %661 = vmatprep.subr.mxu0 0.0
        %662 = vmatpush2.msra.mxu0 0.0
        %663 = vmatprep.subr.mxu0 0.0
        %664 = vmatpush2.msra.mxu0 0.0
        %665 = vmatprep.subr.mxu0 0.0
        %666 = vmatpush2.msra.mxu0 0.0
        %667 = vmatprep.subr.mxu0 0.0
        %668 = vmatpush2.msra.mxu0 0.0
        %669 = vmatprep.subr.mxu0 0.0
        %670 = vmatpush2.msra.mxu0 0.0
        %671 = vmatprep.subr.mxu0 0.0
        %672 = vmatpush2.msra.mxu0 0.0
        %673 = vmatprep.mubr.f32.mxu0 0.0
        %674 = vmatmul.mubr.f32.gmra.mxu0 %v558
        %v675 = vpop.f32.mrf.mxu0
        %v676 = vadd.f32 0.0, %v675
        %v677 = vpop.f32.mrf.mxu0
        %v678 = vadd.f32 0.0, %v677
        %679 = vmatprep.mubr.f32.mxu0 0.0
        %680 = vmatmul.mubr.f32.gmra.mxu0 %v561
        %v681 = vpop.f32.mrf.mxu0
        %v682 = vadd.f32 0.0, %v681
        %v683 = vpop.f32.mrf.mxu0
        %v684 = vadd.f32 0.0, %v683
        %685 = vmatprep.mubr.f32.mxu0 0.0
        %686 = vmatmul.mubr.f32.gmra.mxu0 %v564
        %v687 = vpop.f32.mrf.mxu0
        %v688 = vadd.f32 0.0, %v687
        %v689 = vpop.f32.mrf.mxu0
        %v690 = vadd.f32 0.0, %v689
        %691 = vmatprep.mubr.f32.mxu0 0.0
        %692 = vmatmul.mubr.f32.gmra.mxu0 %v567
        %v693 = vpop.f32.mrf.mxu0
        %v694 = vadd.f32 0.0, %v693
        %v695 = vpop.f32.mrf.mxu0
        %v696 = vadd.f32 0.0, %v695
        %697 = vmatprep.mubr.f32.mxu0 0.0
        %698 = vmatmul.mubr.f32.gmra.mxu0 %v570
        %v699 = vpop.f32.mrf.mxu0
        %v700 = vadd.f32 0.0, %v699
        %v701 = vpop.f32.mrf.mxu0
        %v702 = vadd.f32 0.0, %v701
        %703 = vmatprep.mubr.f32.mxu0 0.0
        %704 = vmatmul.mubr.f32.gmra.mxu0 %v573
        %v705 = vpop.f32.mrf.mxu0
        %v706 = vadd.f32 0.0, %v705
        %v707 = vpop.f32.mrf.mxu0
        %v708 = vadd.f32 0.0, %v707
        %709 = vmatprep.mubr.f32.mxu0 0.0
        %710 = vmatmul.mubr.f32.gmra.mxu0 %v576
        %v711 = vpop.f32.mrf.mxu0
        %v712 = vadd.f32 0.0, %v711
        %v713 = vpop.f32.mrf.mxu0
        %v714 = vadd.f32 0.0, %v713
        %715 = vmatprep.mubr.f32.mxu0 0.0
        %716 = vmatmul.mubr.f32.gmra.mxu0 %v579
        %v717 = vpop.f32.mrf.mxu0
        %v718 = vadd.f32 0.0, %v717
        %v719 = vpop.f32.mrf.mxu0
        %v720 = vadd.f32 0.0, %v719
        %721 = vmatprep.mubr.f32.mxu0 0.0
        %722 = vmatmul.mubr.f32.gmra.mxu0 %v582
        %v723 = vpop.f32.mrf.mxu0
        %v724 = vadd.f32 0.0, %v723
        %v725 = vpop.f32.mrf.mxu0
        %v726 = vadd.f32 0.0, %v725
        %727 = vmatprep.mubr.f32.mxu0 0.0
        %728 = vmatmul.mubr.f32.gmra.mxu0 %v585
        %v729 = vpop.f32.mrf.mxu0
        %v730 = vadd.f32 0.0, %v729
        %v731 = vpop.f32.mrf.mxu0
        %v732 = vadd.f32 0.0, %v731
        %733 = vmatprep.mubr.f32.mxu0 0.0
        %734 = vmatmul.mubr.f32.gmra.mxu0 %v588
        %v735 = vpop.f32.mrf.mxu0
        %v736 = vadd.f32 0.0, %v735
        %v737 = vpop.f32.mrf.mxu0
        %v738 = vadd.f32 0.0, %v737
        %739 = vmatprep.mubr.f32.mxu0 0.0
        %740 = vmatmul.mubr.f32.gmra.mxu0 %v591
        %v741 = vpop.f32.mrf.mxu0
        %v742 = vadd.f32 0.0, %v741
        %v743 = vpop.f32.mrf.mxu0
        %v744 = vadd.f32 0.0, %v743
        %745 = vmatprep.mubr.f32.mxu0 0.0
        %746 = vmatmul.mubr.f32.gmra.mxu0 %v594
        %v747 = vpop.f32.mrf.mxu0
        %v748 = vadd.f32 0.0, %v747
        %v749 = vpop.f32.mrf.mxu0
        %v750 = vadd.f32 0.0, %v749
        %751 = vmatprep.mubr.f32.mxu0 0.0
        %752 = vmatmul.mubr.f32.gmra.mxu0 %v597
        %v753 = vpop.f32.mrf.mxu0
        %v754 = vadd.f32 0.0, %v753
        %v755 = vpop.f32.mrf.mxu0
        %v756 = vadd.f32 0.0, %v755
        %757 = vmatprep.mubr.f32.mxu0 0.0
        %758 = vmatmul.mubr.f32.gmra.mxu0 %v600
        %v759 = vpop.f32.mrf.mxu0
        %v760 = vadd.f32 0.0, %v759
        %v761 = vpop.f32.mrf.mxu0
        %v762 = vadd.f32 0.0, %v761
        %763 = vmatprep.mubr.f32.mxu0 0.0
        %764 = vmatmul.mubr.f32.gmra.mxu0 %v603
        %v765 = vpop.f32.mrf.mxu0
        %v766 = vadd.f32 0.0, %v765
        %v767 = vpop.f32.mrf.mxu0
        %v768 = vadd.f32 0.0, %v767
        %769 = vdwg.mxu0
        %v770 = vmax.f32 %v676, %v678
        %771 = vmax.xlane.f32.xlu0 %v770
        %v772 = vpop.xlane.xlu0 %771
        %v773 = vmax.f32 %v682, %v684
        %774 = vmax.xlane.f32.xlu0 %v773
        %v775 = vpop.xlane.xlu0 %774
        %v776 = vmax.f32 %v688, %v690
        %777 = vmax.xlane.f32.xlu0 %v776
        %v778 = vpop.xlane.xlu0 %777
        %v779 = vmax.f32 %v694, %v696
        %780 = vmax.xlane.f32.xlu0 %v779
        %v781 = vpop.xlane.xlu0 %780
        %v782 = vmax.f32 %v700, %v702
        %783 = vmax.xlane.f32.xlu0 %v782
        %v784 = vpop.xlane.xlu0 %783
        %v785 = vmax.f32 %v706, %v708
        %786 = vmax.xlane.f32.xlu0 %v785
        %v787 = vpop.xlane.xlu0 %786
        %v788 = vmax.f32 %v712, %v714
        %789 = vmax.xlane.f32.xlu0 %v788
        %v790 = vpop.xlane.xlu0 %789
        %v791 = vmax.f32 %v718, %v720
        %792 = vmax.xlane.f32.xlu0 %v791
        %v793 = vpop.xlane.xlu0 %792
        %v794 = vmax.f32 %v724, %v726
        %795 = vmax.xlane.f32.xlu0 %v794
        %v796 = vpop.xlane.xlu0 %795
        %v797 = vmax.f32 %v730, %v732
        %798 = vmax.xlane.f32.xlu0 %v797
        %v799 = vpop.xlane.xlu0 %798
        %v800 = vmax.f32 %v736, %v738
        %801 = vmax.xlane.f32.xlu0 %v800
        %v802 = vpop.xlane.xlu0 %801
        %v803 = vmax.f32 %v742, %v744
        %804 = vmax.xlane.f32.xlu0 %v803
        %v805 = vpop.xlane.xlu0 %804
        %v806 = vmax.f32 %v748, %v750
        %807 = vmax.xlane.f32.xlu0 %v806
        %v808 = vpop.xlane.xlu0 %807
        %v809 = vmax.f32 %v754, %v756
        %810 = vmax.xlane.f32.xlu0 %v809
        %v811 = vpop.xlane.xlu0 %810
        %v812 = vmax.f32 %v760, %v762
        %813 = vmax.xlane.f32.xlu0 %v812
        %v814 = vpop.xlane.xlu0 %813
        %v815 = vmax.f32 %v766, %v768
        %816 = vmax.xlane.f32.xlu0 %v815
        %v817 = vpop.xlane.xlu0 %816
        %v818 = vsub.f32 %v676, %v772
        %v819 = vsub.f32 %v678, %v772
        %v820 = vsub.f32 %v682, %v775
        %v821 = vsub.f32 %v684, %v775
        %v822 = vsub.f32 %v688, %v778
        %v823 = vsub.f32 %v690, %v778
        %v824 = vsub.f32 %v694, %v781
        %v825 = vsub.f32 %v696, %v781
        %v826 = vsub.f32 %v700, %v784
        %v827 = vsub.f32 %v702, %v784
        %v828 = vsub.f32 %v706, %v787
        %v829 = vsub.f32 %v708, %v787
        %v830 = vsub.f32 %v712, %v790
        %v831 = vsub.f32 %v714, %v790
        %v832 = vsub.f32 %v718, %v793
        %v833 = vsub.f32 %v720, %v793
        %v834 = vsub.f32 %v724, %v796
        %v835 = vsub.f32 %v726, %v796
        %v836 = vsub.f32 %v730, %v799
        %v837 = vsub.f32 %v732, %v799
        %v838 = vsub.f32 %v736, %v802
        %v839 = vsub.f32 %v738, %v802
        %v840 = vsub.f32 %v742, %v805
        %v841 = vsub.f32 %v744, %v805
        %v842 = vsub.f32 %v748, %v808
        %v843 = vsub.f32 %v750, %v808
        %v844 = vsub.f32 %v754, %v811
        %v845 = vsub.f32 %v756, %v811
        %v846 = vsub.f32 %v760, %v814
        %v847 = vsub.f32 %v762, %v814
        %v848 = vsub.f32 %v766, %v817
        %v849 = vsub.f32 %v768, %v817
        %v850 = vmul.f32 %v818, 1.442695
        %v851 = vpow.pop %v850
        %v852 = vmul.f32 %v819, 1.442695
        %v853 = vpow.pop %v852
        %v854 = vmul.f32 %v820, 1.442695
        %v855 = vpow.pop %v854
        %v856 = vmul.f32 %v821, 1.442695
        %v857 = vpow.pop %v856
        %v858 = vmul.f32 %v822, 1.442695
        %v859 = vpow.pop %v858
        %v860 = vmul.f32 %v823, 1.442695
        %v861 = vpow.pop %v860
        %v862 = vmul.f32 %v824, 1.442695
        %v863 = vpow.pop %v862
        %v864 = vmul.f32 %v825, 1.442695
        %v865 = vpow.pop %v864
        %v866 = vmul.f32 %v826, 1.442695
        %v867 = vpow.pop %v866
        %v868 = vmul.f32 %v827, 1.442695
        %v869 = vpow.pop %v868
        %v870 = vmul.f32 %v828, 1.442695
        %v871 = vpow.pop %v870
        %v872 = vmul.f32 %v829, 1.442695
        %v873 = vpow.pop %v872
        %v874 = vmul.f32 %v830, 1.442695
        %v875 = vpow.pop %v874
        %v876 = vmul.f32 %v831, 1.442695
        %v877 = vpow.pop %v876
        %v878 = vmul.f32 %v832, 1.442695
        %v879 = vpow.pop %v878
        %v880 = vmul.f32 %v833, 1.442695
        %v881 = vpow.pop %v880
        %v882 = vmul.f32 %v834, 1.442695
        %v883 = vpow.pop %v882
        %v884 = vmul.f32 %v835, 1.442695
        %v885 = vpow.pop %v884
        %v886 = vmul.f32 %v836, 1.442695
        %v887 = vpow.pop %v886
        %v888 = vmul.f32 %v837, 1.442695
        %v889 = vpow.pop %v888
        %v890 = vmul.f32 %v838, 1.442695
        %v891 = vpow.pop %v890
        %v892 = vmul.f32 %v839, 1.442695
        %v893 = vpow.pop %v892
        %v894 = vmul.f32 %v840, 1.442695
        %v895 = vpow.pop %v894
        %v896 = vmul.f32 %v841, 1.442695
        %v897 = vpow.pop %v896
        %v898 = vmul.f32 %v842, 1.442695
        %v899 = vpow.pop %v898
        %v900 = vmul.f32 %v843, 1.442695
        %v901 = vpow.pop %v900
        %v902 = vmul.f32 %v844, 1.442695
        %v903 = vpow.pop %v902
        %v904 = vmul.f32 %v845, 1.442695
        %v905 = vpow.pop %v904
        %v906 = vmul.f32 %v846, 1.442695
        %v907 = vpow.pop %v906
        %v908 = vmul.f32 %v847, 1.442695
        %v909 = vpow.pop %v908
        %v910 = vmul.f32 %v848, 1.442695
        %v911 = vpow.pop %v910
        %v912 = vmul.f32 %v849, 1.442695
        %v913 = vpow.pop %v912
        %v914 = vadd.f32 %v851, %v853
        %915 = vadd.xlane.f32.xlu0 %v914
        %v916 = vpop.xlane.xlu0 %915
        %v917 = vadd.f32 %v855, %v857
        %918 = vadd.xlane.f32.xlu0 %v917
        %v919 = vpop.xlane.xlu0 %918
        %v920 = vadd.f32 %v859, %v861
        %921 = vadd.xlane.f32.xlu0 %v920
        %v922 = vpop.xlane.xlu0 %921
        %v923 = vadd.f32 %v863, %v865
        %924 = vadd.xlane.f32.xlu0 %v923
        %v925 = vpop.xlane.xlu0 %924
        %v926 = vadd.f32 %v867, %v869
        %927 = vadd.xlane.f32.xlu0 %v926
        %v928 = vpop.xlane.xlu0 %927
        %v929 = vadd.f32 %v871, %v873
        %930 = vadd.xlane.f32.xlu0 %v929
        %v931 = vpop.xlane.xlu0 %930
        %v932 = vadd.f32 %v875, %v877
        %933 = vadd.xlane.f32.xlu0 %v932
        %v934 = vpop.xlane.xlu0 %933
        %v935 = vadd.f32 %v879, %v881
        %936 = vadd.xlane.f32.xlu0 %v935
        %v937 = vpop.xlane.xlu0 %936
        %v938 = vadd.f32 %v883, %v885
        %939 = vadd.xlane.f32.xlu0 %v938
        %v940 = vpop.xlane.xlu0 %939
        %v941 = vadd.f32 %v887, %v889
        %942 = vadd.xlane.f32.xlu0 %v941
        %v943 = vpop.xlane.xlu0 %942
        %v944 = vadd.f32 %v891, %v893
        %945 = vadd.xlane.f32.xlu0 %v944
        %v946 = vpop.xlane.xlu0 %945
        %v947 = vadd.f32 %v895, %v897
        %948 = vadd.xlane.f32.xlu0 %v947
        %v949 = vpop.xlane.xlu0 %948
        %v950 = vadd.f32 %v899, %v901
        %951 = vadd.xlane.f32.xlu0 %v950
        %v952 = vpop.xlane.xlu0 %951
        %v953 = vadd.f32 %v903, %v905
        %954 = vadd.xlane.f32.xlu0 %v953
        %v955 = vpop.xlane.xlu0 %954
        %v956 = vadd.f32 %v907, %v909
        %957 = vadd.xlane.f32.xlu0 %v956
        %v958 = vpop.xlane.xlu0 %957
        %v959 = vadd.f32 %v911, %v913
        %960 = vadd.xlane.f32.xlu0 %v959
        %v961 = vpop.xlane.xlu0 %960
        %v962 = vrcp.pop %v916
        %v963 = vmul.f32 %v851, %v962
        %v964 = vmul.f32 %v853, %v962
        %v965 = vrcp.pop %v919
        %v966 = vmul.f32 %v855, %v965
        %v967 = vmul.f32 %v857, %v965
        %v968 = vrcp.pop %v922
        %v969 = vmul.f32 %v859, %v968
        %v970 = vmul.f32 %v861, %v968
        %v971 = vrcp.pop %v925
        %v972 = vmul.f32 %v863, %v971
        %v973 = vmul.f32 %v865, %v971
        %v974 = vrcp.pop %v928
        %v975 = vmul.f32 %v867, %v974
        %v976 = vmul.f32 %v869, %v974
        %v977 = vrcp.pop %v931
        %v978 = vmul.f32 %v871, %v977
        %v979 = vmul.f32 %v873, %v977
        %v980 = vrcp.pop %v934
        %v981 = vmul.f32 %v875, %v980
        %v982 = vmul.f32 %v877, %v980
        %v983 = vrcp.pop %v937
        %v984 = vmul.f32 %v879, %v983
        %v985 = vmul.f32 %v881, %v983
        %v986 = vrcp.pop %v940
        %v987 = vmul.f32 %v883, %v986
        %v988 = vmul.f32 %v885, %v986
        %v989 = vrcp.pop %v943
        %v990 = vmul.f32 %v887, %v989
        %v991 = vmul.f32 %v889, %v989
        %v992 = vrcp.pop %v946
        %v993 = vmul.f32 %v891, %v992
        %v994 = vmul.f32 %v893, %v992
        %v995 = vrcp.pop %v949
        %v996 = vmul.f32 %v895, %v995
        %v997 = vmul.f32 %v897, %v995
        %v998 = vrcp.pop %v952
        %v999 = vmul.f32 %v899, %v998
        %v1000 = vmul.f32 %v901, %v998
        %v1001 = vrcp.pop %v955
        %v1002 = vmul.f32 %v903, %v1001
        %v1003 = vmul.f32 %v905, %v1001
        %v1004 = vrcp.pop %v958
        %v1005 = vmul.f32 %v907, %v1004
        %v1006 = vmul.f32 %v909, %v1004
        %v1007 = vrcp.pop %v961
        %v1008 = vmul.f32 %v911, %v1007
        %v1009 = vmul.f32 %v913, %v1007
        %1011 = vmatprep.subr.mxu0 %v1009
        %1012 = vmatpush1.xpose.msra.mxu0 %v1008
        %1013 = vmatprep.subr.mxu0 %v1006
        %1014 = vmatpush1.xpose.msra.mxu0 %v1005
        %1015 = vmatprep.subr.mxu0 %v1003
        %1016 = vmatpush1.xpose.msra.mxu0 %v1002
        %1017 = vmatprep.subr.mxu0 %v1000
        %1018 = vmatpush1.xpose.msra.mxu0 %v999
        %1019 = vmatprep.subr.mxu0 %v997
        %1020 = vmatpush1.xpose.msra.mxu0 %v996
        %1021 = vmatprep.subr.mxu0 %v994
        %1022 = vmatpush1.xpose.msra.mxu0 %v993
        %1023 = vmatprep.subr.mxu0 %v991
        %1024 = vmatpush1.xpose.msra.mxu0 %v990
        %1025 = vmatprep.subr.mxu0 %v988
        %1026 = vmatpush1.xpose.msra.mxu0 %v987
        %1027 = vmatprep.subr.mxu0 %v985
        %1028 = vmatpush1.xpose.msra.mxu0 %v984
        %1029 = vmatprep.subr.mxu0 %v982
        %1030 = vmatpush1.xpose.msra.mxu0 %v981
        %1031 = vmatprep.subr.mxu0 %v979
        %1032 = vmatpush1.xpose.msra.mxu0 %v978
        %1033 = vmatprep.subr.mxu0 %v976
        %1034 = vmatpush1.xpose.msra.mxu0 %v975
        %1035 = vmatprep.subr.mxu0 %v973
        %1036 = vmatpush1.xpose.msra.mxu0 %v972
        %1037 = vmatprep.subr.mxu0 %v970
        %1038 = vmatpush1.xpose.msra.mxu0 %v969
        %1039 = vmatprep.subr.mxu0 %v967
        %1040 = vmatpush1.xpose.msra.mxu0 %v966
        %1041 = vmatprep.subr.mxu0 %v964
        %1042 = vmatpush1.xpose.msra.mxu0 %v963
        %1043 = vmatprep.subr.mxu0 0.0
        %1044 = vmatpush2.xpose.msra.mxu0 0.0
        %1045 = vmatprep.subr.mxu0 0.0
        %1046 = vmatpush2.xpose.msra.mxu0 0.0
        %1047 = vmatprep.subr.mxu0 0.0
        %1048 = vmatpush2.xpose.msra.mxu0 0.0
        %1049 = vmatprep.subr.mxu0 0.0
        %1050 = vmatpush2.xpose.msra.mxu0 0.0
        %1051 = vmatprep.subr.mxu0 0.0
        %1052 = vmatpush2.xpose.msra.mxu0 0.0
        %1053 = vmatprep.subr.mxu0 0.0
        %1054 = vmatpush2.xpose.msra.mxu0 0.0
        %1055 = vmatprep.subr.mxu0 0.0
        %1056 = vmatpush2.xpose.msra.mxu0 0.0
        %1057 = vmatprep.subr.mxu0 0.0
        %1058 = vmatpush2.xpose.msra.mxu0 0.0
        %1059 = vmatprep.subr.mxu0 0.0
        %1060 = vmatpush2.xpose.msra.mxu0 0.0
        %1061 = vmatprep.subr.mxu0 0.0
        %1062 = vmatpush2.xpose.msra.mxu0 0.0
        %1063 = vmatprep.subr.mxu0 0.0
        %1064 = vmatpush2.xpose.msra.mxu0 0.0
        %1065 = vmatprep.subr.mxu0 0.0
        %1066 = vmatpush2.xpose.msra.mxu0 0.0
        %1067 = vmatprep.subr.mxu0 0.0
        %1068 = vmatpush2.xpose.msra.mxu0 0.0
        %1069 = vmatprep.subr.mxu0 0.0
        %1070 = vmatpush2.xpose.msra.mxu0 0.0
        %1071 = vmatprep.subr.mxu0 0.0
        %1072 = vmatpush2.xpose.msra.mxu0 0.0
        %1073 = vmatprep.subr.mxu0 0.0
        %1074 = vmatpush2.xpose.msra.mxu0 0.0
        %1075 = vmatprep.mubr.f32.mxu0 %v556
        %1076 = vmatmul.mubr.f32.gmra.mxu0 %v444
        %v1077 = vpop.f32.mrf.mxu0
        %v1078 = vadd.f32 0.0, %v1077
        %v1079 = vpop.f32.mrf.mxu0
        %1080 = vdwg.mxu0
        %v1081 = vld [vmem:[#allocation3] sm:$0xf]
        %1082 = vxpose.xlu0.b32.start [1/16] %v1081, 128
        %1083 = vxpose.xlu0.b32.cont [2/16] 0.0, 128
        %1084 = vxpose.xlu0.b32.cont [3/16] 0.0, 128
        %1085 = vxpose.xlu0.b32.cont [4/16] 0.0, 128
        %1086 = vxpose.xlu0.b32.cont [5/16] 0.0, 128
        %1087 = vxpose.xlu0.b32.cont [6/16] 0.0, 128
        %1088 = vxpose.xlu0.b32.cont [7/16] 0.0, 128
        %1089 = vxpose.xlu0.b32.cont [8/16] 0.0, 128
        %1090 = vxpose.xlu0.b32.cont [9/16] 0.0, 128
        %1091 = vxpose.xlu0.b32.cont [10/16] 0.0, 128
        %1092 = vxpose.xlu0.b32.cont [11/16] 0.0, 128
        %1093 = vxpose.xlu0.b32.cont [12/16] 0.0, 128
        %1094 = vxpose.xlu0.b32.cont [13/16] 0.0, 128
        %1095 = vxpose.xlu0.b32.cont [14/16] 0.0, 128
        %1096 = vxpose.xlu0.b32.cont [15/16] 0.0, 128
        %1097 = vxpose.xlu0.b32.end [16/16] 0.0, 128
        %v1098 = vpop.trf.xlu0
        %v1099 = vpop.trf.xlu0
        %v1100 = vpop.trf.xlu0
        %v1101 = vpop.trf.xlu0
        %v1102 = vpop.trf.xlu0
        %v1103 = vpop.trf.xlu0
        %v1104 = vpop.trf.xlu0
        %v1105 = vpop.trf.xlu0
        %v1106 = vpop.trf.xlu0
        %v1107 = vpop.trf.xlu0
        %v1108 = vpop.trf.xlu0
        %v1109 = vpop.trf.xlu0
        %v1110 = vpop.trf.xlu0
        %v1111 = vpop.trf.xlu0
        %v1112 = vpop.trf.xlu0
        %v1113 = vpop.trf.xlu0
        %v1115 = vsel %vm445, %v1098, 0
        %1117 = vmatprep.subr.mxu0 0.0
        %1118 = vmatpush1.msra.mxu0 0.0
        %1119 = vmatprep.subr.mxu0 0.0
        %1120 = vmatpush1.msra.mxu0 0.0
        %1121 = vmatprep.subr.mxu0 0.0
        %1122 = vmatpush1.msra.mxu0 0.0
        %1123 = vmatprep.subr.mxu0 0.0
        %1124 = vmatpush1.msra.mxu0 0.0
        %1125 = vmatprep.subr.mxu0 0.0
        %1126 = vmatpush1.msra.mxu0 0.0
        %1127 = vmatprep.subr.mxu0 0.0
        %1128 = vmatpush1.msra.mxu0 0.0
        %1129 = vmatprep.subr.mxu0 0.0
        %1130 = vmatpush1.msra.mxu0 0.0
        %1131 = vmatprep.subr.mxu0 0.0
        %1132 = vmatpush1.msra.mxu0 0.0
        %1133 = vmatprep.subr.mxu0 0.0
        %1134 = vmatpush1.msra.mxu0 0.0
        %1135 = vmatprep.subr.mxu0 0.0
        %1136 = vmatpush1.msra.mxu0 0.0
        %1137 = vmatprep.subr.mxu0 0.0
        %1138 = vmatpush1.msra.mxu0 0.0
        %1139 = vmatprep.subr.mxu0 0.0
        %1140 = vmatpush1.msra.mxu0 0.0
        %1141 = vmatprep.subr.mxu0 0.0
        %1142 = vmatpush1.msra.mxu0 0.0
        %1143 = vmatprep.subr.mxu0 0.0
        %1144 = vmatpush1.msra.mxu0 0.0
        %1145 = vmatprep.subr.mxu0 0.0
        %1146 = vmatpush1.msra.mxu0 0.0
        %1147 = vmatprep.subr.mxu0 0.0
        %1148 = vmatpush1.msra.mxu0 %v451
        %1149 = vmatprep.subr.mxu0 0.0
        %1150 = vmatpush2.msra.mxu0 0.0
        %1151 = vmatprep.subr.mxu0 0.0
        %1152 = vmatpush2.msra.mxu0 0.0
        %1153 = vmatprep.subr.mxu0 0.0
        %1154 = vmatpush2.msra.mxu0 0.0
        %1155 = vmatprep.subr.mxu0 0.0
        %1156 = vmatpush2.msra.mxu0 0.0
        %1157 = vmatprep.subr.mxu0 0.0
        %1158 = vmatpush2.msra.mxu0 0.0
        %1159 = vmatprep.subr.mxu0 0.0
        %1160 = vmatpush2.msra.mxu0 0.0
        %1161 = vmatprep.subr.mxu0 0.0
        %1162 = vmatpush2.msra.mxu0 0.0
        %1163 = vmatprep.subr.mxu0 0.0
        %1164 = vmatpush2.msra.mxu0 0.0
        %1165 = vmatprep.subr.mxu0 0.0
        %1166 = vmatpush2.msra.mxu0 0.0
        %1167 = vmatprep.subr.mxu0 0.0
        %1168 = vmatpush2.msra.mxu0 0.0
        %1169 = vmatprep.subr.mxu0 0.0
        %1170 = vmatpush2.msra.mxu0 0.0
        %1171 = vmatprep.subr.mxu0 0.0
        %1172 = vmatpush2.msra.mxu0 0.0
        %1173 = vmatprep.subr.mxu0 0.0
        %1174 = vmatpush2.msra.mxu0 0.0
        %1175 = vmatprep.subr.mxu0 0.0
        %1176 = vmatpush2.msra.mxu0 0.0
        %1177 = vmatprep.subr.mxu0 0.0
        %1178 = vmatpush2.msra.mxu0 0.0
        %1179 = vmatprep.subr.mxu0 0.0
        %1180 = vmatpush2.msra.mxu0 0.0
        %1181 = vmatprep.mubr.f32.mxu0 0.0
        %1182 = vmatmul.mubr.f32.gmra.mxu0 %v1115
        %v1183 = vpop.f32.mrf.mxu0
        %v1184 = vadd.f32 0.0, %v1183
        %v1185 = vpop.f32.mrf.mxu0
        %1186 = vdwg.mxu0
        %v1187 = vstv %s263
        %v1188 = vmul.f32 %v1187, %v1078
        %v1189 = vstv %s264
        %v1190 = vmul.f32 %v1189, %v1184
        %v1191 = vadd.f32 %v1188, %v1190
        %v1192 = vmul.f32 %v442, 2.0
        %v1193 = vadd.f32 %v1191, %v1192
        %1194 = vst [vmem:[%s262] sm:$0xf] %v1193
        %p1195 = scmp.lt.s32.totalorder %s20, 1
        %s1196 = scalar_select %p1195, %s20, 1
        %p1197 = scmp.lt.s32.totalorder %s21, 1
        %s1198 = scalar_select %p1197, %s21, 1
        %s1199 = smul.addr %s1196, 2
        %s1200 = sadd.s32 %s1198, %s1199
        %s1201 = smul.addr %s1200, 4
        %s1202 = scalar_lea.vmem %s4, %s1201
        // Predicated region
        $region45: #{danet_forward.1} parent=35 // pred_check
          %p1203 = pneg %p144
        $region46: #{danet_forward.1} parent=35 // pred_check_branch
          %1205 = sbr.rel (%p1203) target = $region48
        $region47: #{danet_forward.1} parent=35 // pred_region
          _
        $region48: #{danet_forward.1} parent=35 // pred_fallthru
          _
      $region36: #{danet_forward.1} parent=5 // pred_fallthru
        _
      %p1206 = scmp.le.s32.totalorder 2, %s11
      // Predicated region
      $region49: #{danet_forward.1} parent=5 // pred_check
        %p1207 = pneg %p1206
      $region50: #{danet_forward.1} parent=5 // pred_check_branch
        %1209 = sbr.rel (%p1207) target = $region52
      $region51: #{danet_forward.1} parent=5 // pred_region
        %s1210 = ssub.s32 %s11, 2
        // Predicated region
        $region53: #{danet_forward.1} parent=51 // pred_check
          %p1211 = pneg %p150
        $region54: #{danet_forward.1} parent=51 // pred_check_branch
          %1213 = sbr.rel (%p1211) target = $region56
        $region55: #{danet_forward.1} parent=51 // pred_region
          %p1214 = scmp.lt.s32.totalorder %s22, 1
          %s1215 = scalar_select %p1214, %s22, 1
          %p1216 = scmp.lt.s32.totalorder %s23, 1
          %s1217 = scalar_select %p1216, %s23, 1
          %s1218 = smul.addr %s1215, 2
          %s1219 = sadd.s32 %s1217, %s1218
          %s1220 = smul.addr %s1219, 4
          %s1221 = scalar_lea.vmem %s4, %s1220
        $region56: #{danet_forward.1} parent=51 // pred_fallthru
          _
      $region52: #{danet_forward.1} parent=5 // pred_fallthru
        _
    $region6: #{danet_forward.1} parent=1 // loop_footer
      %s15 = sadd.s32 1, %s11
    $region7: #{danet_forward.1} parent=1 // loop_footer_branch
      %10 = sbr.rel target = $region3
    $region8: #{danet_forward.1} parent=1 // loop_exit
      _
    %1222 = vsyncpa [#allocation5], 1
    %s1223 = scalar_lea.sflag [#allocation5], 1
    %1224 = vsyncpa %s1223, 1

</llo_original>
